<compile_context>
chip_gen: v5e
topology: v5e:2x2
jax: 0.10.0
libtpu: 0.0.40
codegen_flags: <defaults>
</compile_context>

<pallas_src>
import jax
import jax.numpy as jnp
from jax.experimental import pallas as pl
from jax.experimental.pallas import tpu as pltpu

HIDDEN_SIZE = 64
INPUT_SIZE = 1
OUTPUT_SIZE = 2
LANE = 128  # batch tiles are multiples of the 128-wide lane dimension


def _round_up(n, m):
    return ((n + m - 1) // m) * m


def mynet_kernel(xt_ref, w1_ref, b1_ref, w2_ref, b2_ref, w3_ref, b3_ref, o_ref):
    # Feature-major layout: columns are batch elements (lane-dense).
    # fc1 + ReLU on the VPU (K=1 -> broadcast FMA, not an MXU matmul):
    #   (64, 1) * (1, tb) + (64, 1) -> (64, tb)
    h1 = jnp.maximum(w1_ref[...] * xt_ref[...] + b1_ref[...], 0.0)

    # fc2 + ReLU on the MXU: (64, 64) @ (64, tb) -> (64, tb)
    h2 = jnp.dot(w2_ref[...], h1, preferred_element_type=jnp.float32)
    h2 = jnp.maximum(h2 + b2_ref[...], 0.0)

    # fc3 on the MXU: (2, 64) @ (64, tb) -> (2, tb), already lane-dense output.
    h3 = jnp.dot(w3_ref[...], h2, preferred_element_type=jnp.float32)
    o_ref[...] = (h3 + b3_ref[...]).astype(o_ref.dtype)


def prepare_params(W1, b1, W2, b2, W3, b3):
    """Convert torch-layout params (out,in weights, 1-D biases) to kernel layout.

    Hoisted out of mynet_forward so it is not re-emitted on every call.
    The feature-major formulation uses torch weights as-is (reshapes only).
    """
    return (
        W1.reshape(HIDDEN_SIZE, INPUT_SIZE).astype(jnp.float32),
        b1.reshape(HIDDEN_SIZE, 1).astype(jnp.float32),
        W2.astype(jnp.float32),                      # (64, 64)
        b2.reshape(HIDDEN_SIZE, 1).astype(jnp.float32),
        W3.astype(jnp.float32),                      # (2, 64)
        b3.reshape(OUTPUT_SIZE, 1).astype(jnp.float32),
    )


def _choose_tile(B, tile_b, min_steps=2):
    """Batch tile: multiple of 128, capped by tile_b, single step for small B,
    >= min_steps steps (v7x dual-TC) when the batch is large enough."""
    bp128 = _round_up(max(B, 1), LANE)
    tb = min(_round_up(tile_b, LANE), bp128)
    if bp128 // tb < min_steps and bp128 >= min_steps * LANE:
        tb = _round_up(pl.cdiv(bp128, min_steps), LANE)
    return tb


def mynet_forward(x, kernel_params, *, tile_b=2048):
    """x: (B, 1) float32. kernel_params: output of prepare_params. Returns (B, 2)."""
    assert x.ndim == 2 and x.shape[1] == INPUT_SIZE == 1
    w1, b1, w2, b2, w3, b3 = kernel_params

    B = x.shape[0]
    tb = _choose_tile(B, tile_b)
    Bp = _round_up(B, tb)

    # Batch along lanes: (B, 1) -> (1, Bp) (lane-dense input, 4 B/row of HBM).
    xt = x.reshape(1, B)
    if Bp != B:
        xt = jnp.pad(xt, ((0, 0), (0, Bp - B)))

    grid = (Bp // tb,)

    def const_spec(arr):
        # Same block every grid step -> stays resident in VMEM (no re-DMA).
        return pl.BlockSpec(arr.shape, lambda i: (0, 0))

    out_t = pl.pallas_call(
        mynet_kernel,
        out_shape=jax.ShapeDtypeStruct((OUTPUT_SIZE, Bp), jnp.float32),
        grid=grid,
        in_specs=[
            pl.BlockSpec((1, tb), lambda i: (0, i)),   # x: batch-tiled along lanes
            const_spec(w1),
            const_spec(b1),
            const_spec(w2),
            const_spec(b2),
            const_spec(w3),
            const_spec(b3),
        ],
        out_specs=pl.BlockSpec((OUTPUT_SIZE, tb), lambda i: (0, i)),
        compiler_params=pltpu.CompilerParams(
            dimension_semantics=("parallel",),
        ),
    )(xt, w1, b1, w2, b2, w3, b3)

    # Slice off batch padding and transpose back to (B, 2) (tiny).
    return out_t[:, :B].T


def init_params(key):
    # Deterministic synthetic init, PyTorch nn.Linear layout: W (out, in), b (out,).
    k1, k2, k3, k4, k5, k6 = jax.random.split(key, 6)

    def uinit(k, shape, fan_in):
        bound = 1.0 / jnp.sqrt(float(fan_in))
        return jax.random.uniform(k, shape, jnp.float32, -bound, bound)

    W1 = uinit(k1, (HIDDEN_SIZE, INPUT_SIZE), INPUT_SIZE)
    b1 = uinit(k2, (HIDDEN_SIZE,), INPUT_SIZE)
    W2 = uinit(k3, (HIDDEN_SIZE, HIDDEN_SIZE), HIDDEN_SIZE)
    b2 = uinit(k4, (HIDDEN_SIZE,), HIDDEN_SIZE)
    W3 = uinit(k5, (OUTPUT_SIZE, HIDDEN_SIZE), HIDDEN_SIZE)
    b3 = uinit(k6, (OUTPUT_SIZE,), HIDDEN_SIZE)
    return W1, b1, W2, b2, W3, b3


if __name__ == "__main__":
    key = jax.random.PRNGKey(0)

    # 100 scalar samples, like np.linspace(x_start, x_end, 100) fed as (N, 1).
    B = 100
    x = jnp.linspace(-4.0, 7.0, B, dtype=jnp.float32).reshape(B, INPUT_SIZE)

    W1, b1, W2, b2, W3, b3 = init_params(key)
    kernel_params = prepare_params(W1, b1, W2, b2, W3, b3)  # hoisted weight prep

    out = mynet_forward(x, kernel_params)
    out = jax.block_until_ready(out)

    # Reference in plain JAX (torch semantics: y = x @ W.T + b). All-f32 path.
    ref = jnp.maximum(x @ W1.T + b1, 0.0)
    ref = jnp.maximum(ref @ W2.T + b2, 0.0)
    ref = ref @ W3.T + b3

    assert out.shape == (B, OUTPUT_SIZE)
    assert jnp.allclose(out, ref, atol=1e-5, rtol=1e-5)

    print("KERNEL_OK")
</pallas_src>

<mosaic_0001>
module attributes {stable_mosaic.version = 11 : i64} {
  func.func @mynet_kernel(%arg0: i32, %arg1: memref<1x128xf32, #tpu.memory_space<vmem>>, %arg2: memref<64x1xf32, #tpu.memory_space<vmem>>, %arg3: memref<64x1xf32, #tpu.memory_space<vmem>>, %arg4: memref<64x64xf32, #tpu.memory_space<vmem>>, %arg5: memref<64x1xf32, #tpu.memory_space<vmem>>, %arg6: memref<2x64xf32, #tpu.memory_space<vmem>>, %arg7: memref<2x1xf32, #tpu.memory_space<vmem>>, %arg8: memref<2x128xf32, #tpu.memory_space<vmem>>) attributes {dimension_semantics = [#tpu.dimension_semantics<parallel>], iteration_bounds = array<i64: 1>, scalar_prefetch = 0 : i64, scratch_operands = 0 : i64, tpu.core_type = #tpu.core_type<tc>, window_params = [{transform_indices = @transform_0, window_bounds = array<i64: 1, 128>}, {pipeline_mode = #tpu.pipeline_mode<synchronous>, transform_indices = @transform_1, window_bounds = array<i64: 64, 1>}, {pipeline_mode = #tpu.pipeline_mode<synchronous>, transform_indices = @transform_2, window_bounds = array<i64: 64, 1>}, {pipeline_mode = #tpu.pipeline_mode<synchronous>, transform_indices = @transform_3, window_bounds = array<i64: 64, 64>}, {pipeline_mode = #tpu.pipeline_mode<synchronous>, transform_indices = @transform_4, window_bounds = array<i64: 64, 1>}, {pipeline_mode = #tpu.pipeline_mode<synchronous>, transform_indices = @transform_5, window_bounds = array<i64: 2, 64>}, {pipeline_mode = #tpu.pipeline_mode<synchronous>, transform_indices = @transform_6, window_bounds = array<i64: 2, 1>}, {transform_indices = @transform_7, window_bounds = array<i64: 2, 128>}]} {
    %c0 = arith.constant 0 : index
    %c0_0 = arith.constant 0 : index
    %0 = vector.load %arg2[%c0, %c0_0] : memref<64x1xf32, #tpu.memory_space<vmem>>, vector<64x1xf32>
    %c0_1 = arith.constant 0 : index
    %c0_2 = arith.constant 0 : index
    %1 = vector.load %arg1[%c0_1, %c0_2] : memref<1x128xf32, #tpu.memory_space<vmem>>, vector<1x128xf32>
    %2 = vector.broadcast %0 : vector<64x1xf32> to vector<64x128xf32>
    %3 = vector.broadcast %1 : vector<1x128xf32> to vector<64x128xf32>
    %4 = arith.mulf %2, %3 : vector<64x128xf32>
    %c0_3 = arith.constant 0 : index
    %c0_4 = arith.constant 0 : index
    %5 = vector.load %arg3[%c0_3, %c0_4] : memref<64x1xf32, #tpu.memory_space<vmem>>, vector<64x1xf32>
    %6 = vector.broadcast %5 : vector<64x1xf32> to vector<64x128xf32>
    %7 = arith.addf %4, %6 : vector<64x128xf32>
    %cst = arith.constant 0.000000e+00 : f32
    %8 = vector.broadcast %cst : f32 to vector<64x128xf32>
    %9 = arith.maximumf %7, %8 : vector<64x128xf32>
    %c0_5 = arith.constant 0 : index
    %c0_6 = arith.constant 0 : index
    %10 = vector.load %arg4[%c0_5, %c0_6] : memref<64x64xf32, #tpu.memory_space<vmem>>, vector<64x64xf32>
    %cst_7 = arith.constant dense<0.000000e+00> : vector<64x128xf32>
    %11 = tpu.matmul %10, %9, %cst_7 {dimension_numbers = #tpu.dot_dimension_numbers<[1], [0], [0], [1], [0, 0, 1, 1], [], []>} : vector<64x64xf32>, vector<64x128xf32>, vector<64x128xf32> -> vector<64x128xf32>
    %c0_8 = arith.constant 0 : index
    %c0_9 = arith.constant 0 : index
    %12 = vector.load %arg5[%c0_8, %c0_9] : memref<64x1xf32, #tpu.memory_space<vmem>>, vector<64x1xf32>
    %13 = vector.broadcast %12 : vector<64x1xf32> to vector<64x128xf32>
    %14 = arith.addf %11, %13 : vector<64x128xf32>
    %cst_10 = arith.constant 0.000000e+00 : f32
    %15 = vector.broadcast %cst_10 : f32 to vector<64x128xf32>
    %16 = arith.maximumf %14, %15 : vector<64x128xf32>
    %c0_11 = arith.constant 0 : index
    %c0_12 = arith.constant 0 : index
    %17 = vector.load %arg6[%c0_11, %c0_12] : memref<2x64xf32, #tpu.memory_space<vmem>>, vector<2x64xf32>
    %cst_13 = arith.constant dense<0.000000e+00> : vector<2x128xf32>
    %18 = tpu.matmul %17, %16, %cst_13 {dimension_numbers = #tpu.dot_dimension_numbers<[1], [0], [0], [1], [0, 0, 1, 1], [], []>} : vector<2x64xf32>, vector<64x128xf32>, vector<2x128xf32> -> vector<2x128xf32>
    %c0_14 = arith.constant 0 : index
    %c0_15 = arith.constant 0 : index
    %19 = vector.load %arg7[%c0_14, %c0_15] : memref<2x1xf32, #tpu.memory_space<vmem>>, vector<2x1xf32>
    %20 = vector.broadcast %19 : vector<2x1xf32> to vector<2x128xf32>
    %21 = arith.addf %18, %20 : vector<2x128xf32>
    %c0_16 = arith.constant 0 : index
    %c0_17 = arith.constant 0 : index
    %22 = vector.load %arg8[%c0_16, %c0_17] : memref<2x128xf32, #tpu.memory_space<vmem>>, vector<2x128xf32>
    tpu.vector_store %arg8[%c0_16, %c0_17], %21 {strides = array<i32>} : memref<2x128xf32, #tpu.memory_space<vmem>>, vector<2x128xf32>,
    return
  }
  func.func @transform_0(%arg0: i32) -> (i32, i32) {
    %c0_i32 = arith.constant 0 : i32
    %c0_i32_0 = arith.constant 0 : i32
    return %c0_i32, %arg0 : i32, i32
  }
  func.func @transform_1(%arg0: i32) -> (i32, i32) {
    %c0_i32 = arith.constant 0 : i32
    %c0_i32_0 = arith.constant 0 : i32
    %c0_i32_1 = arith.constant 0 : i32
    return %c0_i32, %c0_i32_0 : i32, i32
  }
  func.func @transform_2(%arg0: i32) -> (i32, i32) {
    %c0_i32 = arith.constant 0 : i32
    %c0_i32_0 = arith.constant 0 : i32
    %c0_i32_1 = arith.constant 0 : i32
    return %c0_i32, %c0_i32_0 : i32, i32
  }
  func.func @transform_3(%arg0: i32) -> (i32, i32) {
    %c0_i32 = arith.constant 0 : i32
    %c0_i32_0 = arith.constant 0 : i32
    %c0_i32_1 = arith.constant 0 : i32
    return %c0_i32, %c0_i32_0 : i32, i32
  }
  func.func @transform_4(%arg0: i32) -> (i32, i32) {
    %c0_i32 = arith.constant 0 : i32
    %c0_i32_0 = arith.constant 0 : i32
    %c0_i32_1 = arith.constant 0 : i32
    return %c0_i32, %c0_i32_0 : i32, i32
  }
  func.func @transform_5(%arg0: i32) -> (i32, i32) {
    %c0_i32 = arith.constant 0 : i32
    %c0_i32_0 = arith.constant 0 : i32
    %c0_i32_1 = arith.constant 0 : i32
    return %c0_i32, %c0_i32_0 : i32, i32
  }
  func.func @transform_6(%arg0: i32) -> (i32, i32) {
    %c0_i32 = arith.constant 0 : i32
    %c0_i32_0 = arith.constant 0 : i32
    %c0_i32_1 = arith.constant 0 : i32
    return %c0_i32, %c0_i32_0 : i32, i32
  }
  func.func @transform_7(%arg0: i32) -> (i32, i32) {
    %c0_i32 = arith.constant 0 : i32
    %c0_i32_0 = arith.constant 0 : i32
    return %c0_i32, %arg0 : i32, i32
  }
}

</mosaic_0001>

<llo_original>
// kernel: tpu_custom_call.1
$region0: #{tpu_custom_call.1}
  #allocation0 [shape = 'u32[]', space=smem, size = 0x4, offset = 0x4, fixed_abs, tag = 'smem constant byte address 0x4 - core index']
  #allocation1 [shape = 'u32[72,128]{1,0:T(1,128)}', space=vmem, size = 0x9000, scoped, tag = 'internal scratch']
  %s0 = inlined_call_operand.vmem [shape: f32[1,128], index: 0, kind: input, shape index: {}]
  %s1 = inlined_call_operand.vmem [shape: f32[64,1], index: 1, kind: input, shape index: {}]
  %s2 = inlined_call_operand.vmem [shape: f32[64,1], index: 2, kind: input, shape index: {}]
  %s3 = inlined_call_operand.vmem [shape: f32[64,64], index: 3, kind: input, shape index: {}]
  %s4 = inlined_call_operand.vmem [shape: f32[64,1], index: 4, kind: input, shape index: {}]
  %s5 = inlined_call_operand.vmem [shape: f32[2,64], index: 5, kind: input, shape index: {}]
  %s6 = inlined_call_operand.vmem [shape: f32[2,1], index: 6, kind: input, shape index: {}]
  %s7 = inlined_call_operand.hbm [shape: f32[2,128], index: 7, kind: output, shape index: {}]
  %s8 = sld [smem:[#allocation0]]
  $region38: #{tpu_custom_call.1} parent=0
    _
  %s10 = ssub.s32 1, %s8
  %s11 = scalar_select 0, %s10, %s8
  $region1: #{tpu_custom_call.1} parent=0
    #allocation2 [shape = 'u8[1024]{0}', space=vmem, size = 0x400, scoped, tag = 'output window, operand 0, single buffered']
    #allocation3 [shape = 's32[1]{0}', space=sflag, size = 0x4, scoped, tag = 'scoped memory for tpu_custom_call.1']
    %12 = vsyncpa [#allocation3], 0
    // Predicated region
    $region2: #{tpu_custom_call.1} parent=1 // pred_check
      _
    $region3: #{tpu_custom_call.1} parent=1 // pred_check_branch
      %14 = sbr.rel (0) target = $region5
    $region4: #{tpu_custom_call.1} parent=1 // pred_region
      _
    $region5: #{tpu_custom_call.1} parent=1 // pred_fallthru
      _
    // Predicated region
    $region6: #{tpu_custom_call.1} parent=1 // pred_check
      _
    $region7: #{tpu_custom_call.1} parent=1 // pred_check_branch
      %16 = sbr.rel (0) target = $region9
    $region8: #{tpu_custom_call.1} parent=1 // pred_region
      _
    $region9: #{tpu_custom_call.1} parent=1 // pred_fallthru
      _
    // Predicated region
    $region10: #{tpu_custom_call.1} parent=1 // pred_check
      _
    $region11: #{tpu_custom_call.1} parent=1 // pred_check_branch
      %18 = sbr.rel (0) target = $region13
    $region12: #{tpu_custom_call.1} parent=1 // pred_region
      _
    $region13: #{tpu_custom_call.1} parent=1 // pred_fallthru
      _
    // Predicated region
    $region14: #{tpu_custom_call.1} parent=1 // pred_check
      _
    $region15: #{tpu_custom_call.1} parent=1 // pred_check_branch
      %20 = sbr.rel (0) target = $region17
    $region16: #{tpu_custom_call.1} parent=1 // pred_region
      _
    $region17: #{tpu_custom_call.1} parent=1 // pred_fallthru
      _
    // Predicated region
    $region18: #{tpu_custom_call.1} parent=1 // pred_check
      _
    $region19: #{tpu_custom_call.1} parent=1 // pred_check_branch
      %22 = sbr.rel (0) target = $region21
    $region20: #{tpu_custom_call.1} parent=1 // pred_region
      _
    $region21: #{tpu_custom_call.1} parent=1 // pred_fallthru
      _
    // Predicated region
    $region22: #{tpu_custom_call.1} parent=1 // pred_check
      _
    $region23: #{tpu_custom_call.1} parent=1 // pred_check_branch
      %24 = sbr.rel (0) target = $region25
    $region24: #{tpu_custom_call.1} parent=1 // pred_region
      _
    $region25: #{tpu_custom_call.1} parent=1 // pred_fallthru
      _
    // Predicated region
    $region26: #{tpu_custom_call.1} parent=1 // pred_check
      _
    $region27: #{tpu_custom_call.1} parent=1 // pred_check_branch
      %26 = sbr.rel (0) target = $region29
    $region28: #{tpu_custom_call.1} parent=1 // pred_region
      _
    $region29: #{tpu_custom_call.1} parent=1 // pred_fallthru
      _
    %v27 = vld [vmem:[%s1] sm:$0xff]
    %v28 = vld [vmem:[%s1 + $0x8] sm:$0xff]
    %v29 = vld [vmem:[%s1 + $0x10] sm:$0xff]
    %v30 = vld [vmem:[%s1 + $0x18] sm:$0xff]
    %v31 = vld [vmem:[%s1 + $0x20] sm:$0xff]
    %v32 = vld [vmem:[%s1 + $0x28] sm:$0xff]
    %v33 = vld [vmem:[%s1 + $0x30] sm:$0xff]
    %v34 = vld [vmem:[%s1 + $0x38] sm:$0xff]
    %v35 = vld [vmem:[%s0] sm:$0x1]
    %37 = vset.pattern.permute.xlu0 0
    %38 = vperm.xlu0 %37, %v27
    %v39 = vpop.permute.xlu0 %38
    %42 = vset.pattern.permute.xlu0 0
    %43 = vperm.xlu0 %42, %v28
    %v44 = vpop.permute.xlu0 %43
    %47 = vset.pattern.permute.xlu0 0
    %48 = vperm.xlu0 %47, %v29
    %v49 = vpop.permute.xlu0 %48
    %52 = vset.pattern.permute.xlu0 0
    %53 = vperm.xlu0 %52, %v30
    %v54 = vpop.permute.xlu0 %53
    %57 = vset.pattern.permute.xlu0 0
    %58 = vperm.xlu0 %57, %v31
    %v59 = vpop.permute.xlu0 %58
    %62 = vset.pattern.permute.xlu0 0
    %63 = vperm.xlu0 %62, %v32
    %v64 = vpop.permute.xlu0 %63
    %67 = vset.pattern.permute.xlu0 0
    %68 = vperm.xlu0 %67, %v33
    %v69 = vpop.permute.xlu0 %68
    %72 = vset.pattern.permute.xlu0 0
    %73 = vperm.xlu0 %72, %v34
    %v74 = vpop.permute.xlu0 %73
    %v77 = vperm.slane %v35, 0
    %v79 = vmul.f32 %v39, %v77
    %v80 = vmul.f32 %v44, %v77
    %v81 = vmul.f32 %v49, %v77
    %v82 = vmul.f32 %v54, %v77
    %v83 = vmul.f32 %v59, %v77
    %v84 = vmul.f32 %v64, %v77
    %v85 = vmul.f32 %v69, %v77
    %v86 = vmul.f32 %v74, %v77
    %v87 = vld [vmem:[%s2] sm:$0xff]
    %v88 = vld [vmem:[%s2 + $0x8] sm:$0xff]
    %v89 = vld [vmem:[%s2 + $0x10] sm:$0xff]
    %v90 = vld [vmem:[%s2 + $0x18] sm:$0xff]
    %v91 = vld [vmem:[%s2 + $0x20] sm:$0xff]
    %v92 = vld [vmem:[%s2 + $0x28] sm:$0xff]
    %v93 = vld [vmem:[%s2 + $0x30] sm:$0xff]
    %v94 = vld [vmem:[%s2 + $0x38] sm:$0xff]
    %96 = vset.pattern.permute.xlu0 0
    %97 = vperm.xlu0 %96, %v87
    %v98 = vpop.permute.xlu0 %97
    %101 = vset.pattern.permute.xlu0 0
    %102 = vperm.xlu0 %101, %v88
    %v103 = vpop.permute.xlu0 %102
    %106 = vset.pattern.permute.xlu0 0
    %107 = vperm.xlu0 %106, %v89
    %v108 = vpop.permute.xlu0 %107
    %111 = vset.pattern.permute.xlu0 0
    %112 = vperm.xlu0 %111, %v90
    %v113 = vpop.permute.xlu0 %112
    %116 = vset.pattern.permute.xlu0 0
    %117 = vperm.xlu0 %116, %v91
    %v118 = vpop.permute.xlu0 %117
    %121 = vset.pattern.permute.xlu0 0
    %122 = vperm.xlu0 %121, %v92
    %v123 = vpop.permute.xlu0 %122
    %126 = vset.pattern.permute.xlu0 0
    %127 = vperm.xlu0 %126, %v93
    %v128 = vpop.permute.xlu0 %127
    %131 = vset.pattern.permute.xlu0 0
    %132 = vperm.xlu0 %131, %v94
    %v133 = vpop.permute.xlu0 %132
    %v135 = vadd.f32 %v79, %v98
    %v136 = vadd.f32 %v80, %v103
    %v137 = vadd.f32 %v81, %v108
    %v138 = vadd.f32 %v82, %v113
    %v139 = vadd.f32 %v83, %v118
    %v140 = vadd.f32 %v84, %v123
    %v141 = vadd.f32 %v85, %v128
    %v142 = vadd.f32 %v86, %v133
    %v143 = vmax.f32 %v135, 0.0
    %v144 = vmax.f32 %v136, 0.0
    %v145 = vmax.f32 %v137, 0.0
    %v146 = vmax.f32 %v138, 0.0
    %v147 = vmax.f32 %v139, 0.0
    %v148 = vmax.f32 %v140, 0.0
    %v149 = vmax.f32 %v141, 0.0
    %v150 = vmax.f32 %v142, 0.0
    %v151 = vld [vmem:[%s3] sm:$0xff]
    %v152 = vld [vmem:[%s3 + $0x8] sm:$0xff]
    %v153 = vld [vmem:[%s3 + $0x10] sm:$0xff]
    %v154 = vld [vmem:[%s3 + $0x18] sm:$0xff]
    %v155 = vld [vmem:[%s3 + $0x20] sm:$0xff]
    %v156 = vld [vmem:[%s3 + $0x28] sm:$0xff]
    %v157 = vld [vmem:[%s3 + $0x30] sm:$0xff]
    %v158 = vld [vmem:[%s3 + $0x38] sm:$0xff]
    %v159 = vld [vmem:[%s4] sm:$0xff]
    %v160 = vld [vmem:[%s4 + $0x8] sm:$0xff]
    %v161 = vld [vmem:[%s4 + $0x10] sm:$0xff]
    %v162 = vld [vmem:[%s4 + $0x18] sm:$0xff]
    %v163 = vld [vmem:[%s4 + $0x20] sm:$0xff]
    %v164 = vld [vmem:[%s4 + $0x28] sm:$0xff]
    %v165 = vld [vmem:[%s4 + $0x30] sm:$0xff]
    %v166 = vld [vmem:[%s4 + $0x38] sm:$0xff]
    %168 = vset.pattern.permute.xlu0 0
    %169 = vperm.xlu0 %168, %v159
    %v170 = vpop.permute.xlu0 %169
    %173 = vset.pattern.permute.xlu0 0
    %174 = vperm.xlu0 %173, %v160
    %v175 = vpop.permute.xlu0 %174
    %178 = vset.pattern.permute.xlu0 0
    %179 = vperm.xlu0 %178, %v161
    %v180 = vpop.permute.xlu0 %179
    %183 = vset.pattern.permute.xlu0 0
    %184 = vperm.xlu0 %183, %v162
    %v185 = vpop.permute.xlu0 %184
    %188 = vset.pattern.permute.xlu0 0
    %189 = vperm.xlu0 %188, %v163
    %v190 = vpop.permute.xlu0 %189
    %193 = vset.pattern.permute.xlu0 0
    %194 = vperm.xlu0 %193, %v164
    %v195 = vpop.permute.xlu0 %194
    %198 = vset.pattern.permute.xlu0 0
    %199 = vperm.xlu0 %198, %v165
    %v200 = vpop.permute.xlu0 %199
    %203 = vset.pattern.permute.xlu0 0
    %204 = vperm.xlu0 %203, %v166
    %v205 = vpop.permute.xlu0 %204
    %vm207 = vcmask 523264
    %v209 = vsel %vm207, %v151, 0
    %v212 = vsel %vm207, %v152, 0
    %v215 = vsel %vm207, %v153, 0
    %v218 = vsel %vm207, %v154, 0
    %v221 = vsel %vm207, %v155, 0
    %v224 = vsel %vm207, %v156, 0
    %v227 = vsel %vm207, %v157, 0
    %v230 = vsel %vm207, %v158, 0
    %232 = vmatpush.msra.mxu0 0.0
    %233 = vmatpush.msra.mxu0 0.0
    %234 = vmatpush.msra.mxu0 0.0
    %235 = vmatpush.msra.mxu0 0.0
    %236 = vmatpush.msra.mxu0 0.0
    %237 = vmatpush.msra.mxu0 0.0
    %238 = vmatpush.msra.mxu0 0.0
    %239 = vmatpush.msra.mxu0 0.0
    %240 = vmatpush.msra.mxu0 %v150
    %241 = vmatpush.msra.mxu0 %v149
    %242 = vmatpush.msra.mxu0 %v148
    %243 = vmatpush.msra.mxu0 %v147
    %244 = vmatpush.msra.mxu0 %v146
    %245 = vmatpush.msra.mxu0 %v145
    %246 = vmatpush.msra.mxu0 %v144
    %247 = vmatpush.msra.mxu0 %v143
    %248 = vmatmul.f32.gmra.mxu0 %v209
    %v249 = vpop.f32.mrf.mxu0
    %v250 = vadd.f32 %v170, %v249
    %251 = vmatmul.f32.gmra.mxu0 %v212
    %v252 = vpop.f32.mrf.mxu0
    %v253 = vadd.f32 %v175, %v252
    %254 = vmatmul.f32.gmra.mxu0 %v215
    %v255 = vpop.f32.mrf.mxu0
    %v256 = vadd.f32 %v180, %v255
    %257 = vmatmul.f32.gmra.mxu0 %v218
    %v258 = vpop.f32.mrf.mxu0
    %v259 = vadd.f32 %v185, %v258
    %260 = vmatmul.f32.gmra.mxu0 %v221
    %v261 = vpop.f32.mrf.mxu0
    %v262 = vadd.f32 %v190, %v261
    %263 = vmatmul.f32.gmra.mxu0 %v224
    %v264 = vpop.f32.mrf.mxu0
    %v265 = vadd.f32 %v195, %v264
    %266 = vmatmul.f32.gmra.mxu0 %v227
    %v267 = vpop.f32.mrf.mxu0
    %v268 = vadd.f32 %v200, %v267
    %269 = vmatmul.f32.gmra.mxu0 %v230
    %v270 = vpop.f32.mrf.mxu0
    %v271 = vadd.f32 %v205, %v270
    %272 = vdwg.mxu0
    %v273 = vmax.f32 %v250, 0.0
    %v274 = vmax.f32 %v253, 0.0
    %v275 = vmax.f32 %v256, 0.0
    %v276 = vmax.f32 %v259, 0.0
    %v277 = vmax.f32 %v262, 0.0
    %v278 = vmax.f32 %v265, 0.0
    %v279 = vmax.f32 %v268, 0.0
    %v280 = vmax.f32 %v271, 0.0
    %v281 = vld [vmem:[%s5] sm:$0x3]
    %v282 = vld [vmem:[%s6] sm:$0x3]
    %284 = vset.pattern.permute.xlu0 0
    %285 = vperm.xlu0 %284, %v282
    %v286 = vpop.permute.xlu0 %285
    %v289 = vsel %vm207, %v281, 0
    %291 = vmatpush.msra.mxu0 0.0
    %292 = vmatpush.msra.mxu0 0.0
    %293 = vmatpush.msra.mxu0 0.0
    %294 = vmatpush.msra.mxu0 0.0
    %295 = vmatpush.msra.mxu0 0.0
    %296 = vmatpush.msra.mxu0 0.0
    %297 = vmatpush.msra.mxu0 0.0
    %298 = vmatpush.msra.mxu0 0.0
    %299 = vmatpush.msra.mxu0 %v280
    %300 = vmatpush.msra.mxu0 %v279
    %301 = vmatpush.msra.mxu0 %v278
    %302 = vmatpush.msra.mxu0 %v277
    %303 = vmatpush.msra.mxu0 %v276
    %304 = vmatpush.msra.mxu0 %v275
    %305 = vmatpush.msra.mxu0 %v274
    %306 = vmatpush.msra.mxu0 %v273
    %307 = vmatmul.f32.gmra.mxu0 %v289
    %v308 = vpop.f32.mrf.mxu0
    %v309 = vadd.f32 %v286, %v308
    %310 = vdwg.mxu0
    %311 = vst [vmem:[#allocation2] sm:$0x3] %v309
    // Predicated region
    $region30: #{tpu_custom_call.1} parent=1 // pred_check
      _
    $region31: #{tpu_custom_call.1} parent=1 // pred_check_branch
      %313 = sbr.rel (0) target = $region33
    $region32: #{tpu_custom_call.1} parent=1 // pred_region
      %315 = vsyncadd [#allocation3], 0
      %s317 = sshll.u32 [#allocation2], 4
      %s318 = int_to_ptr.vmem [resolvable:$true] %s317
      %s319 = sshll.u32 %s7, 4
      %s320 = int_to_ptr.hbm [resolvable:$true] %s319
      %322 = dma.vmem_to_hbm [thread:$0]  %s318, 32, %s320, [#allocation3]
    $region33: #{tpu_custom_call.1} parent=1 // pred_fallthru
      _
    // Predicated region
    $region34: #{tpu_custom_call.1} parent=1 // pred_check
      _
    $region35: #{tpu_custom_call.1} parent=1 // pred_check_branch
      %324 = sbr.rel (0) target = $region37
    $region36: #{tpu_custom_call.1} parent=1 // pred_region
      %326 = dma.done [#allocation3], 32
    $region37: #{tpu_custom_call.1} parent=1 // pred_fallthru
      _
    %327 = vsyncpa [#allocation3], 1

</llo_original>
